<compile_context>
chip_gen: v7x
topology: tpu7x:2x2x1
jax: 0.10.0
libtpu: 0.0.40
codegen_flags: <defaults>
</compile_context>

<pallas_src>
import functools

import jax
import jax.numpy as jnp
from jax.experimental import pallas as pl
from jax.experimental.pallas import tpu as pltpu


def _shift2d_kernel(x_ref, o_ref, *, vert: int, horz: int):
    """One (bt, tc, H, W) NCHW block: static-slice copy + band zeroing."""
    BT, TC, H, W = o_ref.shape
    av, ah = abs(vert), abs(horz)

    # All-padding case is handled in the wrapper; keep a static guard anyway.
    if av >= H or ah >= W:
        o_ref[...] = jnp.zeros_like(o_ref)
        return

    # Zero the rows / columns that come from the zero padding.
    if vert > 0:
        o_ref[:, :, 0:av, :] = jnp.zeros((BT, TC, av, W), o_ref.dtype)
    elif vert < 0:
        o_ref[:, :, H - av:H, :] = jnp.zeros((BT, TC, av, W), o_ref.dtype)
    if horz > 0:
        o_ref[:, :, :, 0:ah] = jnp.zeros((BT, TC, H, ah), o_ref.dtype)
    elif horz < 0:
        o_ref[:, :, :, W - ah:W] = jnp.zeros((BT, TC, H, ah), o_ref.dtype)

    # Interior: a single static-slice copy (vert/horz are Python ints).
    dy0, dy1 = (vert, H) if vert >= 0 else (0, H + vert)
    sy0, sy1 = (0, H - vert) if vert >= 0 else (av, H)
    dx0, dx1 = (horz, W) if horz >= 0 else (0, W + horz)
    sx0, sx1 = (0, W - horz) if horz >= 0 else (ah, W)
    o_ref[:, :, dy0:dy1, dx0:dx1] = x_ref[:, :, sy0:sy1, sx0:sx1]


def _vmem_capacity_bytes() -> int:
    """Physical VMEM per TensorCore; conservative fallback (v7x) if unknown."""
    try:
        return int(pltpu.get_tpu_info().vmem_capacity_bytes)
    except Exception:
        return 64 << 20


def _divisors(n: int):
    return [d for d in range(1, n + 1) if n % d == 0]


def _choose_tiles(B: int, C: int, H: int, W: int, itemsize: int,
                  max_block_bytes: int):
    """Pick (batch_tile, channel_tile) with H, W kept whole per block."""
    plane = H * W * itemsize
    c_divs = _divisors(C)
    b_divs = _divisors(B)

    fit_c = [d for d in c_divs if d * plane <= max_block_bytes]
    tc = max(fit_c) if fit_c else 1  # tc=1 may still exceed budget for huge H*W

    bt = 1
    if tc == C:
        fit_b = [d for d in b_divs if d * C * plane <= max_block_bytes]
        if fit_b:
            bt = max(fit_b)

    # Keep at least 2 grid programs when possible (v7x has 2 TensorCores).
    def n_progs(bt_, tc_):
        return (B // bt_) * (C // tc_)

    while n_progs(bt, tc) < 2:
        if bt > 1:
            bt = max(d for d in b_divs if d < bt)
        elif tc > 1:
            tc = max(d for d in c_divs if d < tc)
        else:
            break
    return bt, tc


def shift2d(x: jax.Array, shift) -> jax.Array:
    """Pallas implementation of Shift2d for NCHW input x (no layout plumbing)."""
    vert, horz = int(shift[0]), int(shift[1])
    B, C, H, W = x.shape

    # Early-outs: identity, and shifts past the extent (never stream the input).
    if vert == 0 and horz == 0:
        return x
    if abs(vert) >= H or abs(horz) >= W:
        return jnp.zeros_like(x)

    itemsize = jnp.dtype(x.dtype).itemsize

    # Per-generation VMEM budget: double-buffered in+out blocks (4x) + headroom.
    usable_vmem = int(_vmem_capacity_bytes() * 3 // 4)
    max_block_bytes = min(8 << 20, usable_vmem // 6)
    bt, tc = _choose_tiles(B, C, H, W, itemsize, max_block_bytes)
    block_bytes = bt * tc * H * W * itemsize
    vmem_limit = int(min(usable_vmem, max(16 << 20, 6 * block_bytes)))

    kernel = functools.partial(_shift2d_kernel, vert=vert, horz=horz)
    return pl.pallas_call(
        kernel,
        out_shape=jax.ShapeDtypeStruct((B, C, H, W), x.dtype),
        grid=(B // bt, C // tc),
        in_specs=[pl.BlockSpec((bt, tc, H, W), lambda b, c: (b, c, 0, 0))],
        out_specs=pl.BlockSpec((bt, tc, H, W), lambda b, c: (b, c, 0, 0)),
        compiler_params=pltpu.CompilerParams(
            dimension_semantics=("parallel", "parallel"),
            vmem_limit_bytes=vmem_limit),
    )(x)


def _shift2d_ref(x: jax.Array, shift) -> jax.Array:
    """Pure-JAX reference: zero-pad on the opposite side, then crop."""
    vert, horz = int(shift[0]), int(shift[1])
    y_a, y_b = abs(vert), 0
    x_a, x_b = abs(horz), 0
    if vert < 0:
        y_a, y_b = y_b, y_a
    if horz < 0:
        x_a, x_b = x_b, x_a
    padded = jnp.pad(x, ((0, 0), (0, 0), (y_a, y_b), (x_a, x_b)))
    H_p, W_p = padded.shape[-2], padded.shape[-1]
    return padded[:, :, y_b:H_p - y_a, x_b:W_p - x_a]


if __name__ == "__main__":
    key = jax.random.PRNGKey(0)
    B, C, H, W = 2, 4, 16, 16
    x = jax.random.normal(key, (B, C, H, W), dtype=jnp.float32)

    for shift in [(2, 3), (-1, 2), (0, -4), (3, 0), (1, 1), (0, 0), (20, -20)]:
        out = jax.block_until_ready(shift2d(x, shift))
        ref = _shift2d_ref(x, shift)
        assert out.shape == x.shape and out.dtype == x.dtype
        assert jnp.allclose(out, ref), f"mismatch for shift={shift}"

    print("KERNEL_OK")
</pallas_src>

<mosaic_0001>
module attributes {stable_mosaic.version = 11 : i64} {
  func.func @_shift2d_kernel(%arg0: i32, %arg1: i32, %arg2: memref<1x4x16x16xf32, #tpu.memory_space<vmem>>, %arg3: memref<1x4x16x16xf32, #tpu.memory_space<vmem>>) attributes {dimension_semantics = [#tpu.dimension_semantics<parallel>, #tpu.dimension_semantics<parallel>], iteration_bounds = array<i64: 2, 1>, scalar_prefetch = 0 : i64, scratch_operands = 0 : i64, tpu.core_type = #tpu.core_type<tc>, window_params = [{transform_indices = @transform_0, window_bounds = array<i64: 1, 4, 16, 16>}, {transform_indices = @transform_1, window_bounds = array<i64: 1, 4, 16, 16>}]} {
    %cst = arith.constant 0.000000e+00 : f32
    %0 = vector.broadcast %cst : f32 to vector<1x4x2x16xf32>
    %c0 = arith.constant 0 : index
    %c0_0 = arith.constant 0 : index
    %c0_1 = arith.constant 0 : index
    %c0_2 = arith.constant 0 : index
    %1 = vector.load %arg3[%c0, %c0_0, %c0_1, %c0_2] : memref<1x4x16x16xf32, #tpu.memory_space<vmem>>, vector<1x4x2x16xf32>
    tpu.vector_store %arg3[%c0, %c0_0, %c0_1, %c0_2], %0 {strides = array<i32>} : memref<1x4x16x16xf32, #tpu.memory_space<vmem>>, vector<1x4x2x16xf32>,
    %cst_3 = arith.constant 0.000000e+00 : f32
    %2 = vector.broadcast %cst_3 : f32 to vector<1x4x16x3xf32>
    %c0_4 = arith.constant 0 : index
    %c0_5 = arith.constant 0 : index
    %c0_6 = arith.constant 0 : index
    %c0_7 = arith.constant 0 : index
    %3 = vector.load %arg3[%c0_4, %c0_5, %c0_6, %c0_7] : memref<1x4x16x16xf32, #tpu.memory_space<vmem>>, vector<1x4x16x3xf32>
    tpu.vector_store %arg3[%c0_4, %c0_5, %c0_6, %c0_7], %2 {strides = array<i32>} : memref<1x4x16x16xf32, #tpu.memory_space<vmem>>, vector<1x4x16x3xf32>,
    %c0_8 = arith.constant 0 : index
    %c0_9 = arith.constant 0 : index
    %c0_10 = arith.constant 0 : index
    %c0_11 = arith.constant 0 : index
    %4 = vector.load %arg2[%c0_8, %c0_9, %c0_10, %c0_11] : memref<1x4x16x16xf32, #tpu.memory_space<vmem>>, vector<1x4x14x13xf32>
    %c0_12 = arith.constant 0 : index
    %c0_13 = arith.constant 0 : index
    %c2 = arith.constant 2 : index
    %c3 = arith.constant 3 : index
    %5 = vector.load %arg3[%c0_12, %c0_13, %c2, %c3] : memref<1x4x16x16xf32, #tpu.memory_space<vmem>>, vector<1x4x14x13xf32>
    tpu.vector_store %arg3[%c0_12, %c0_13, %c2, %c3], %4 {strides = array<i32>} : memref<1x4x16x16xf32, #tpu.memory_space<vmem>>, vector<1x4x14x13xf32>,
    return
  }
  func.func @transform_0(%arg0: i32, %arg1: i32) -> (i32, i32, i32, i32) {
    %c0_i32 = arith.constant 0 : i32
    %c0_i32_0 = arith.constant 0 : i32
    %c0_i32_1 = arith.constant 0 : i32
    return %arg0, %arg1, %c0_i32, %c0_i32_0 : i32, i32, i32, i32
  }
  func.func @transform_1(%arg0: i32, %arg1: i32) -> (i32, i32, i32, i32) {
    %c0_i32 = arith.constant 0 : i32
    %c0_i32_0 = arith.constant 0 : i32
    %c0_i32_1 = arith.constant 0 : i32
    return %arg0, %arg1, %c0_i32, %c0_i32_0 : i32, i32, i32, i32
  }
}

</mosaic_0001>

<llo_original>
// kernel: tpu_custom_call.1
$region0: #{tpu_custom_call.1}
  #allocation0 [shape = 'u32[]', space=smem, size = 0x4, offset = 0x4, fixed_abs, tag = 'smem constant byte address 0x4 - core index']
  #allocation1 [shape = 'u32[144,128]{1,0:T(1,128)}', space=vmem, size = 0x12000, scoped, tag = 'internal scratch']
  %s0 = inlined_call_operand.hbm [shape: f32[2,4,16,16], index: 0, kind: input, shape index: {}]
  %s1 = inlined_call_operand.hbm [shape: f32[2,4,16,16], index: 1, kind: output, shape index: {}]
  %s2 = sld [smem:[#allocation0]]
  $region41: #{tpu_custom_call.1} parent=0
    _
  %s4 = ssub.s32 1, %s2
  %s5 = scalar_select 0, %s4, %s2
  $region1: #{tpu_custom_call.1} parent=0
    #allocation2 [shape = 'u8[65536]{0}', space=vmem, size = 0x10000, scoped, tag = 'input window, operand 0']
    #allocation3 [shape = 's32[2]{0}', space=sflag, size = 0x8, scoped, tag = 'scoped memory for tpu_custom_call.1']
    #allocation4 [shape = 's32[2]{0}', space=sflag, size = 0x8, scoped, tag = 'scoped memory for tpu_custom_call.1']
    #allocation5 [shape = 'u8[65536]{0}', space=vmem, size = 0x10000, scoped, tag = 'output window, operand 0']
    %6 = vsyncpa [#allocation3], 0
    %s7 = scalar_lea.sflag [#allocation3], 1
    %8 = vsyncpa %s7, 0
    %9 = vsyncpa [#allocation4], 0
    %s10 = scalar_lea.sflag [#allocation4], 1
    %11 = vsyncpa %s10, 0
    loop: start=0, step=1, limit=4
    $region2: #{tpu_custom_call.1} parent=1 // loop_pre_header
      _
    $region3: #{tpu_custom_call.1} parent=1 // loop_header
      %s13 = sphi 0, %s17
      %p14 = scmp.ge.s32.totalorder %s13, 4
      %s20 = sphi 0, %s32
      %s21 = sphi 0, %s28
      %s22 = sphi 0, %s20
      %s23 = sphi 0, %s21
      %s24 = sphi 0, %s22
      %s25 = sphi 0, %s23
      %s37 = sphi 0, %s39
      %s40 = sphi 0, %s37
      %s41 = sphi 0, %s40
      %s57 = sphi 0, %s41
      %s65 = sphi 0, %s67
      %s68 = sphi 0, %s65
      %s69 = sphi 0, %s68
      %s85 = sphi 0, %s69
    $region4: #{tpu_custom_call.1} parent=1 // loop_header_branch
      %16 = sbr.rel (%p14) target = $region8
    $region5: #{tpu_custom_call.1} parent=1 // loop_body
      %s18 = ssub.s32 %s13, 1
      %s19 = ssub.s32 %s13, 2
      %s26 = sadd.s32 1, %s21
      %p27 = scmp.ge.s32.totalorder %s26, 1
      %s28 = scalar_select %p27, 0, %s26
      %s29 = sadd.s32 1, %s20
      %s30 = scalar_select %p27, %s29, %s20
      %p31 = scmp.ge.s32.totalorder %s30, 2
      %s32 = scalar_select %p31, 0, %s30
      %s33 = ssub.s32 %s20, %s32
      %s34 = ssub.s32 %s21, %s28
      %s35 = sor.u32 %s33, %s34
      %p36 = scmp.eq.s32.totalorder %s35, 0
      %s38 = sadd.s32 %s37, 1
      %s39 = scalar_select %p36, %s37, %s38
      %p42 = pneg %p36
      %p43 = scmp.eq.s32.totalorder %s13, 1
      %p44 = por %p42, %p43
      %p45 = scmp.ne.s32.totalorder %s37, %s40
      %p46 = scmp.eq.s32.totalorder %s13, 0
      %p47 = por %p45, %p46
      %p48 = scmp.ne.s32.totalorder %s37, %s40
      %p49 = scmp.eq.s32.totalorder %s18, 1
      %p50 = por %p48, %p49
      %p51 = scmp.ne.s32.totalorder %s40, %s41
      %p52 = scmp.eq.s32.totalorder %s18, 0
      %p53 = por %p51, %p52
      %p54 = scmp.ne.s32.totalorder %s40, %s41
      %p55 = scmp.eq.s32.totalorder %s19, 1
      %p56 = por %p54, %p55
      %p58 = scmp.ne.s32.totalorder %s41, %s57
      %p59 = scmp.eq.s32.totalorder %s19, 0
      %p60 = por %p58, %p59
      %s61 = ssub.s32 %s20, %s32
      %s62 = ssub.s32 %s21, %s28
      %s63 = sor.u32 %s61, %s62
      %p64 = scmp.eq.s32.totalorder %s63, 0
      %s66 = sadd.s32 %s65, 1
      %s67 = scalar_select %p64, %s65, %s66
      %p70 = pneg %p64
      %p71 = scmp.eq.s32.totalorder %s13, 1
      %p72 = por %p70, %p71
      %p73 = scmp.ne.s32.totalorder %s65, %s68
      %p74 = scmp.eq.s32.totalorder %s13, 0
      %p75 = por %p73, %p74
      %p76 = scmp.ne.s32.totalorder %s65, %s68
      %p77 = scmp.eq.s32.totalorder %s18, 1
      %p78 = por %p76, %p77
      %p79 = scmp.ne.s32.totalorder %s68, %s69
      %p80 = scmp.eq.s32.totalorder %s18, 0
      %p81 = por %p79, %p80
      %p82 = scmp.ne.s32.totalorder %s68, %s69
      %p83 = scmp.eq.s32.totalorder %s19, 1
      %p84 = por %p82, %p83
      %p86 = scmp.ne.s32.totalorder %s69, %s85
      %p87 = scmp.eq.s32.totalorder %s19, 0
      %p88 = por %p86, %p87
      %p89 = scmp.le.s32.totalorder 1, %s13
      %p90 = scmp.lt.s32.totalorder %s13, 3
      %p91 = pnand %p89, %p90
      %p92 = pneg %p91
      // Predicated region
      $region9: #{tpu_custom_call.1} parent=5 // pred_check
        _
      $region10: #{tpu_custom_call.1} parent=5 // pred_check_branch
        %94 = sbr.rel (%p91) target = $region12
      $region11: #{tpu_custom_call.1} parent=5 // pred_region
        %s95 = ssub.s32 %s13, 1
      $region12: #{tpu_custom_call.1} parent=5 // pred_fallthru
        _
      %p96 = scmp.lt.s32.totalorder %s13, 2
      // Predicated region
      $region13: #{tpu_custom_call.1} parent=5 // pred_check
        %p97 = pneg %p96
      $region14: #{tpu_custom_call.1} parent=5 // pred_check_branch
        %99 = sbr.rel (%p97) target = $region16
      $region15: #{tpu_custom_call.1} parent=5 // pred_region
        // Predicated region
        $region17: #{tpu_custom_call.1} parent=15 // pred_check
          %p100 = pneg %p47
        $region18: #{tpu_custom_call.1} parent=15 // pred_check_branch
          %102 = sbr.rel (%p100) target = $region20
        $region19: #{tpu_custom_call.1} parent=15 // pred_region
          %s103 = sand.u32 %s37, 1
          %s104 = scalar_lea.sflag [#allocation3], %s103
          %s105 = sand.u32 %s37, 1
          %s106 = smul.addr %s105, 64
          %s107 = scalar_lea.vmem [#allocation2], %s106
          %s108 = smul.u32 4, %s21
          %s110 = ssub.s32 1024, 1024
          %111 = vsyncadd %s104, %s110
          %s112 = smul.addr %s108, 2
          %s113 = smul.addr %s20, 8
          %s114 = sadd.s32 %s112, %s113
          %s115 = smul.addr %s114, 128
          %s116 = scalar_lea.hbm %s0, %s115
          %s117 = sshll.u32 %s107, 4
          %s118 = int_to_ptr.vmem [resolvable:$true] %s117
          %123 = dma.hbm_to_vmem [thread:$0]  %s116, 1024, %s118, %s104, 128, 128, 8
        $region20: #{tpu_custom_call.1} parent=15 // pred_fallthru
          _
      $region16: #{tpu_custom_call.1} parent=5 // pred_fallthru
        _
      %p124 = scmp.le.s32.totalorder 1, %s13
      %p125 = scmp.lt.s32.totalorder %s13, 3
      %p126 = pnand %p124, %p125
      %p127 = pneg %p126
      // Predicated region
      $region21: #{tpu_custom_call.1} parent=5 // pred_check
        _
      $region22: #{tpu_custom_call.1} parent=5 // pred_check_branch
        %129 = sbr.rel (%p126) target = $region24
      $region23: #{tpu_custom_call.1} parent=5 // pred_region
        %s130 = ssub.s32 %s13, 1
        %s131 = sand.u32 %s40, 1
        %s132 = scalar_lea.sflag [#allocation3], %s131
        %s133 = sand.u32 %s40, 1
        %s134 = smul.addr %s133, 64
        %s135 = scalar_lea.vmem [#allocation2], %s134
        // Predicated region
        $region25: #{tpu_custom_call.1} parent=23 // pred_check
          %p136 = pneg %p53
        $region26: #{tpu_custom_call.1} parent=23 // pred_check_branch
          %138 = sbr.rel (%p136) target = $region28
        $region27: #{tpu_custom_call.1} parent=23 // pred_region
          %139 = dma.done %s132, 1024
        $region28: #{tpu_custom_call.1} parent=23 // pred_fallthru
          _
        %s140 = sand.u32 %s40, 1
        %s141 = scalar_lea.sflag [#allocation3], %s140
        %s142 = sand.u32 %s40, 1
        %s143 = smul.addr %s142, 64
        %s144 = scalar_lea.vmem [#allocation2], %s143
        %p145 = pneg %p53
        %p146 = pneg %p50
        %p147 = pneg %p81
        %p148 = pneg %p78
        %s149 = sand.u32 %s68, 1
        %s150 = scalar_lea.sflag [#allocation4], %s149
        %s151 = sand.u32 %s68, 1
        %s152 = smul.addr %s151, 64
        %s153 = scalar_lea.vmem [#allocation5], %s152
        %s154 = smul.u32 4, %s23
        %s155 = smul.u32 4, %s23
        %vm156 = vcmask 123904
        %157 = vst.msk [vmem:[%s153] sm:$0x3] %vm156, 0.0
        %158 = vst.msk [vmem:[%s153 + $0x10] sm:$0x3] %vm156, 0.0
        %159 = vst.msk [vmem:[%s153 + $0x20] sm:$0x3] %vm156, 0.0
        %160 = vst.msk [vmem:[%s153 + $0x30] sm:$0x3] %vm156, 0.0
        %vm161 = vcmask 23552
        %162 = vst.msk [vmem:[%s153] sm:$0xff] %vm161, 0.0
        %163 = vst.msk [vmem:[%s153 + $0x8] sm:$0xff] %vm161, 0.0
        %164 = vst.msk [vmem:[%s153 + $0x10] sm:$0xff] %vm161, 0.0
        %165 = vst.msk [vmem:[%s153 + $0x18] sm:$0xff] %vm161, 0.0
        %166 = vst.msk [vmem:[%s153 + $0x20] sm:$0xff] %vm161, 0.0
        %167 = vst.msk [vmem:[%s153 + $0x28] sm:$0xff] %vm161, 0.0
        %168 = vst.msk [vmem:[%s153 + $0x30] sm:$0xff] %vm161, 0.0
        %169 = vst.msk [vmem:[%s153 + $0x38] sm:$0xff] %vm161, 0.0
        %v170 = vld [vmem:[%s135] sm:$0xff]
        %v171 = vld [vmem:[%s135 + $0x8] sm:$0x3f]
        %v172 = vld [vmem:[%s135 + $0x10] sm:$0xff]
        %v173 = vld [vmem:[%s135 + $0x18] sm:$0x3f]
        %v174 = vld [vmem:[%s135 + $0x20] sm:$0xff]
        %v175 = vld [vmem:[%s135 + $0x28] sm:$0x3f]
        %v176 = vld [vmem:[%s135 + $0x30] sm:$0xff]
        %v177 = vld [vmem:[%s135 + $0x38] sm:$0x3f]
        %186 = vrot.lane.b32.xlu0 %v170, 3
        %v187 = vpop.permute.xlu0 %186
        %188 = vrot.lane.b32.xlu0 %v171, 3
        %v189 = vpop.permute.xlu0 %188
        %190 = vrot.lane.b32.xlu0 %v172, 3
        %v191 = vpop.permute.xlu0 %190
        %192 = vrot.lane.b32.xlu0 %v173, 3
        %v193 = vpop.permute.xlu0 %192
        %194 = vrot.lane.b32.xlu0 %v174, 3
        %v195 = vpop.permute.xlu0 %194
        %196 = vrot.lane.b32.xlu0 %v175, 3
        %v197 = vpop.permute.xlu0 %196
        %198 = vrot.lane.b32.xlu0 %v176, 3
        %v199 = vpop.permute.xlu0 %198
        %200 = vrot.lane.b32.xlu0 %v177, 3
        %v201 = vpop.permute.xlu0 %200
        %vm210 = vcmask 130072
        %211 = vst.msk [vmem:[%s153 + $0x2] sm:$0xff] %vm210, %v187
        %vm212 = vcmask 128024
        %213 = vst.msk [vmem:[%s153 + $0xa] sm:$0x3f] %vm212, %v189
        %214 = vst.msk [vmem:[%s153 + $0x12] sm:$0xff] %vm210, %v191
        %215 = vst.msk [vmem:[%s153 + $0x1a] sm:$0x3f] %vm212, %v193
        %216 = vst.msk [vmem:[%s153 + $0x22] sm:$0xff] %vm210, %v195
        %217 = vst.msk [vmem:[%s153 + $0x2a] sm:$0x3f] %vm212, %v197
        %218 = vst.msk [vmem:[%s153 + $0x32] sm:$0xff] %vm210, %v199
        %219 = vst.msk [vmem:[%s153 + $0x3a] sm:$0x3f] %vm212, %v201
        %s220 = sand.u32 %s68, 1
        %s221 = scalar_lea.sflag [#allocation4], %s220
        %s222 = sand.u32 %s68, 1
        %s223 = smul.addr %s222, 64
        %s224 = scalar_lea.vmem [#allocation5], %s223
        // Predicated region
        $region29: #{tpu_custom_call.1} parent=23 // pred_check
          %p225 = pneg %p78
        $region30: #{tpu_custom_call.1} parent=23 // pred_check_branch
          %227 = sbr.rel (%p225) target = $region32
        $region31: #{tpu_custom_call.1} parent=23 // pred_region
          %s228 = smul.u32 4, %s23
          %s230 = ssub.s32 1024, 1024
          %231 = vsyncadd %s221, %s230
          %s232 = smul.addr %s228, 2
          %s233 = smul.addr %s22, 8
          %s234 = sadd.s32 %s232, %s233
          %s235 = smul.addr %s234, 128
          %s236 = scalar_lea.hbm %s1, %s235
          %s237 = sshll.u32 %s224, 4
          %s238 = int_to_ptr.vmem [resolvable:$true] %s237
          %243 = dma.vmem_to_hbm [thread:$0]  %s238, 1024, %s236, %s221, 128, 128, 8
        $region32: #{tpu_custom_call.1} parent=23 // pred_fallthru
          _
      $region24: #{tpu_custom_call.1} parent=5 // pred_fallthru
        _
      %p244 = scmp.le.s32.totalorder 2, %s13
      // Predicated region
      $region33: #{tpu_custom_call.1} parent=5 // pred_check
        %p245 = pneg %p244
      $region34: #{tpu_custom_call.1} parent=5 // pred_check_branch
        %247 = sbr.rel (%p245) target = $region36
      $region35: #{tpu_custom_call.1} parent=5 // pred_region
        %s248 = ssub.s32 %s13, 2
        // Predicated region
        $region37: #{tpu_custom_call.1} parent=35 // pred_check
          %p249 = pneg %p84
        $region38: #{tpu_custom_call.1} parent=35 // pred_check_branch
          %251 = sbr.rel (%p249) target = $region40
        $region39: #{tpu_custom_call.1} parent=35 // pred_region
          %s252 = sand.u32 %s69, 1
          %s253 = scalar_lea.sflag [#allocation4], %s252
          %s254 = sand.u32 %s69, 1
          %s255 = smul.addr %s254, 64
          %s256 = scalar_lea.vmem [#allocation5], %s255
          %257 = dma.done %s253, 1024
        $region40: #{tpu_custom_call.1} parent=35 // pred_fallthru
          _
      $region36: #{tpu_custom_call.1} parent=5 // pred_fallthru
        _
    $region6: #{tpu_custom_call.1} parent=1 // loop_footer
      %s17 = sadd.s32 1, %s13
    $region7: #{tpu_custom_call.1} parent=1 // loop_footer_branch
      %12 = sbr.rel target = $region3
    $region8: #{tpu_custom_call.1} parent=1 // loop_exit
      _
    %258 = vsyncpa [#allocation3], 1
    %s259 = scalar_lea.sflag [#allocation3], 1
    %260 = vsyncpa %s259, 1
    %261 = vsyncpa [#allocation4], 1
    %s262 = scalar_lea.sflag [#allocation4], 1
    %263 = vsyncpa %s262, 1

</llo_original>
